<compile_context>
chip_gen: v7x
topology: tpu7x:2x2x1
jax: 0.10.0
libtpu: 0.0.40
codegen_flags: <defaults>
</compile_context>

<pallas_src>
import jax
import jax.numpy as jnp
from jax.experimental import pallas as pl
from jax.experimental.pallas import tpu as pltpu

# ---- model dimensions --------------------------------------------------------
N_BOTTOM = 4                        # number of bottom (party-local) models
BOTTOM_IN = 32                      # per-party input feature dim
BOTTOM_OUT = 66                     # 4 * 66 = 264 == TopModel.lin1 in_features
CONCAT = N_BOTTOM * BOTTOM_OUT      # 264
STACK_IN = N_BOTTOM * BOTTOM_IN     # 128  (exactly one lane tile)
HID = 100
N_OUT = 10

NEG_SLOPE = 0.01                    # nn.LeakyReLU default


# ---- kernel ------------------------------------------------------------------
def vfl_kernel(x0_ref, x1_ref, x2_ref, x3_ref, wf_ref, w2_ref, bias_ref,
               out_ref):
    """One batch tile of the fused VFL forward.

    x*_ref   : [TB, 32]    per-party inputs (f32 or bf16)
    wf_ref   : [128, 100]  blockdiag(Wb) @ W1   (f32 or bf16)
    w2_ref   : [100, 10]   W2                   (f32 or bf16)
    bias_ref : [2, 128]    row 0 = fused lin1 bias, row 1 = lin2 bias (f32)
    out_ref  : [TB, 10]    f32
    """
    bias = bias_ref[...]                         # (2, 128) f32
    b_h = bias[0:1, :HID]                        # (1, 100)
    b_o = bias[1:2, :N_OUT]                      # (1, 10)

    x_refs = (x0_ref, x1_ref, x2_ref, x3_ref)

    # lin1 with the bottom models folded in: accumulate the 4 per-party
    # contractions in f32 on the MXU (static row-slices of the fused weight).
    h = jnp.dot(x_refs[0][...], wf_ref[0:BOTTOM_IN, :],
                preferred_element_type=jnp.float32)
    for p in range(1, N_BOTTOM):
        lo = p * BOTTOM_IN
        h = h + jnp.dot(x_refs[p][...], wf_ref[lo:lo + BOTTOM_IN, :],
                        preferred_element_type=jnp.float32)

    # bias + relu(leaky_relu(z)) == relu(z)
    h = jnp.maximum(h + b_h, 0.0)

    # lin2 + bias, LeakyReLU epilogue in f32. Dropout(0.1) is identity at
    # inference.
    # TODO(synk): training-mode dropout would need pltpu.prng_seed/prng_random_bits.
    y = jnp.dot(h.astype(w2_ref.dtype), w2_ref[...],
                preferred_element_type=jnp.float32) + b_o
    out_ref[...] = jnp.where(y > 0, y, NEG_SLOPE * y)


# ---- parameters --------------------------------------------------------------
def init_params(key):
    """Unfused parameters; stored as [in_features, out_features] (transpose of
    PyTorch nn.Linear.weight), shapes matching the module."""
    ks = jax.random.split(key, 2 * N_BOTTOM + 4)
    p = {}
    for i in range(N_BOTTOM):
        p[f"wb{i}"] = jax.random.normal(ks[2 * i], (BOTTOM_IN, BOTTOM_OUT),
                                        jnp.float32) * 0.05
        p[f"bb{i}"] = jax.random.normal(ks[2 * i + 1], (1, BOTTOM_OUT),
                                        jnp.float32) * 0.05
    k = 2 * N_BOTTOM
    p["w1"] = jax.random.normal(ks[k], (CONCAT, HID), jnp.float32) * 0.05
    p["b1"] = jax.random.normal(ks[k + 1], (1, HID), jnp.float32) * 0.05
    p["w2"] = jax.random.normal(ks[k + 2], (HID, N_OUT), jnp.float32) * 0.05
    p["b2"] = jax.random.normal(ks[k + 3], (1, N_OUT), jnp.float32) * 0.05
    return p


def fuse_params(p, weight_dtype=jnp.float32):
    """One-time offline fold of the bottom Linears into lin1 (NOT per call).

    concat_i(x_i @ Wb_i + bb_i) @ W1 + b1
        == sum_i x_i @ (Wb_i @ W1_slice_i) + (b1 + sum_i bb_i @ W1_slice_i)
    """
    w_fused = jnp.zeros((STACK_IN, HID), jnp.float32)
    b_fused = p["b1"]
    for i in range(N_BOTTOM):
        w1_i = p["w1"][i * BOTTOM_OUT:(i + 1) * BOTTOM_OUT, :]          # (66, 100)
        w_fused = w_fused.at[i * BOTTOM_IN:(i + 1) * BOTTOM_IN, :].set(
            p[f"wb{i}"] @ w1_i)
        b_fused = b_fused + p[f"bb{i}"] @ w1_i

    # Pack the two remaining biases into one lane-aligned (2, 128) f32 array.
    bias = jnp.zeros((2, 128), jnp.float32)
    bias = bias.at[0, :HID].set(b_fused[0])
    bias = bias.at[1, :N_OUT].set(p["b2"][0])

    return {
        "w_fused": w_fused.astype(weight_dtype),   # [128, 100]
        "w2": p["w2"].astype(weight_dtype),        # [100, 10]
        "bias": bias,                              # [2, 128] f32 (epilogue in f32)
    }


# ---- wrapper -----------------------------------------------------------------
def vfl_forward(xs, fused, *, block_b=512):
    """xs: list of N_BOTTOM arrays, each [B, 32]. Returns [B, 10] f32."""
    assert len(xs) == N_BOTTOM
    wdt = fused["w_fused"].dtype
    xs = [x.astype(wdt) for x in xs]               # bf16 activations iff bf16 weights
    b = xs[0].shape[0]

    if b <= block_b:
        tb = b                                     # single block == full array dims
        padded_b = b
    else:
        tb = block_b                               # multiple of 8
        padded_b = pl.cdiv(b, tb) * tb
        if padded_b != b:
            pad = padded_b - b
            xs = [jnp.pad(x, ((0, pad), (0, 0))) for x in xs]
    grid = (padded_b // tb,)

    in_specs = (
        [pl.BlockSpec((tb, BOTTOM_IN), lambda i: (i, 0))    # batch-tiled inputs
         for _ in range(N_BOTTOM)]
        + [pl.BlockSpec((STACK_IN, HID), lambda i: (0, 0)),  # weights resident
           pl.BlockSpec((HID, N_OUT), lambda i: (0, 0)),
           pl.BlockSpec((2, 128), lambda i: (0, 0))])

    out = pl.pallas_call(
        vfl_kernel,
        out_shape=jax.ShapeDtypeStruct((padded_b, N_OUT), jnp.float32),
        grid_spec=pltpu.PrefetchScalarGridSpec(
            num_scalar_prefetch=0,
            grid=grid,
            in_specs=in_specs,
            out_specs=pl.BlockSpec((tb, N_OUT), lambda i: (i, 0)),
        ),
        compiler_params=pltpu.CompilerParams(
            dimension_semantics=("parallel",)),    # v7x: split batch tiles across TCs
    )(*xs, fused["w_fused"], fused["w2"], fused["bias"])
    return out[:b]


# ---- pure-JAX reference (unfused, mirrors the PyTorch module) ------------------
def vfl_forward_ref(xs, p):
    locals_ = [xs[i] @ p[f"wb{i}"] + p[f"bb{i}"] for i in range(N_BOTTOM)]
    concat = jnp.concatenate(locals_, axis=1)
    h = concat @ p["w1"] + p["b1"]
    h = jnp.where(h > 0, h, NEG_SLOPE * h)         # LeakyReLU
    h = jnp.maximum(h, 0.0)                        # ReLU
    y = h @ p["w2"] + p["b2"]
    return jnp.where(y > 0, y, NEG_SLOPE * y)      # LeakyReLU (dropout = identity)


if __name__ == "__main__":
    key = jax.random.PRNGKey(0)
    pkey, xkey_s, xkey_l = jax.random.split(key, 3)
    params = init_params(pkey)

    # -- small batch (single block), f32 weights: tight check vs reference ------
    fused_f32 = fuse_params(params, jnp.float32)
    B_SMALL = 8
    xs_small = [jax.random.normal(k, (B_SMALL, BOTTOM_IN), jnp.float32)
                for k in jax.random.split(xkey_s, N_BOTTOM)]
    out_s = jax.block_until_ready(vfl_forward(xs_small, fused_f32))
    ref_s = vfl_forward_ref(xs_small, params)
    assert out_s.shape == (B_SMALL, N_OUT)
    assert jnp.allclose(out_s, ref_s, atol=1e-4, rtol=1e-4), "f32 small-batch mismatch"

    # -- larger batch: 1-D grid over 256-row batch tiles, weights stay resident -
    B_LARGE = 1024
    xs_large = [jax.random.normal(k, (B_LARGE, BOTTOM_IN), jnp.float32)
                for k in jax.random.split(xkey_l, N_BOTTOM)]
    out_l = jax.block_until_ready(vfl_forward(xs_large, fused_f32, block_b=256))
    ref_l = vfl_forward_ref(xs_large, params)
    assert out_l.shape == (B_LARGE, N_OUT)
    assert jnp.allclose(out_l, ref_l, atol=1e-4, rtol=1e-4), "f32 large-batch mismatch"

    # -- bf16 weights/activations (native MXU dtype on v6e/v7x), f32 epilogue ---
    fused_bf16 = fuse_params(params, jnp.bfloat16)
    out_bf = jax.block_until_ready(vfl_forward(xs_large, fused_bf16, block_b=256))
    assert out_bf.shape == (B_LARGE, N_OUT)
    assert jnp.allclose(out_bf, ref_l, atol=1e-1, rtol=1e-1), "bf16 mismatch"

    print("KERNEL_OK")
</pallas_src>

<mosaic_0001>
module attributes {stable_mosaic.version = 11 : i64} {
  func.func @vfl_kernel(%arg0: i32, %arg1: memref<8x32xf32, #tpu.memory_space<vmem>>, %arg2: memref<8x32xf32, #tpu.memory_space<vmem>>, %arg3: memref<8x32xf32, #tpu.memory_space<vmem>>, %arg4: memref<8x32xf32, #tpu.memory_space<vmem>>, %arg5: memref<128x100xf32, #tpu.memory_space<vmem>>, %arg6: memref<100x10xf32, #tpu.memory_space<vmem>>, %arg7: memref<2x128xf32, #tpu.memory_space<vmem>>, %arg8: memref<8x10xf32, #tpu.memory_space<vmem>>) attributes {dimension_semantics = [#tpu.dimension_semantics<parallel>], iteration_bounds = array<i64: 1>, scalar_prefetch = 0 : i64, scratch_operands = 0 : i64, tpu.core_type = #tpu.core_type<tc>, window_params = [{transform_indices = @transform_0, window_bounds = array<i64: 8, 32>}, {transform_indices = @transform_1, window_bounds = array<i64: 8, 32>}, {transform_indices = @transform_2, window_bounds = array<i64: 8, 32>}, {transform_indices = @transform_3, window_bounds = array<i64: 8, 32>}, {pipeline_mode = #tpu.pipeline_mode<synchronous>, transform_indices = @transform_4, window_bounds = array<i64: 128, 100>}, {pipeline_mode = #tpu.pipeline_mode<synchronous>, transform_indices = @transform_5, window_bounds = array<i64: 100, 10>}, {pipeline_mode = #tpu.pipeline_mode<synchronous>, transform_indices = @transform_6, window_bounds = array<i64: 2, 128>}, {transform_indices = @transform_7, window_bounds = array<i64: 8, 10>}]} {
    %c0 = arith.constant 0 : index
    %c0_0 = arith.constant 0 : index
    %0 = vector.load %arg7[%c0, %c0_0] : memref<2x128xf32, #tpu.memory_space<vmem>>, vector<2x128xf32>
    %1 = vector.extract_strided_slice %0 {offsets = [0, 0], sizes = [1, 100], strides = [1, 1]} : vector<2x128xf32> to vector<1x100xf32>
    %2 = vector.extract_strided_slice %0 {offsets = [1, 0], sizes = [1, 10], strides = [1, 1]} : vector<2x128xf32> to vector<1x10xf32>
    %c0_1 = arith.constant 0 : index
    %c0_2 = arith.constant 0 : index
    %3 = vector.load %arg1[%c0_1, %c0_2] : memref<8x32xf32, #tpu.memory_space<vmem>>, vector<8x32xf32>
    %c0_3 = arith.constant 0 : index
    %c0_4 = arith.constant 0 : index
    %4 = vector.load %arg5[%c0_3, %c0_4] : memref<128x100xf32, #tpu.memory_space<vmem>>, vector<32x100xf32>
    %cst = arith.constant dense<0.000000e+00> : vector<8x100xf32>
    %5 = tpu.matmul %3, %4, %cst {dimension_numbers = #tpu.dot_dimension_numbers<[1], [0], [0], [1], [0, 0, 1, 1], [], []>} : vector<8x32xf32>, vector<32x100xf32>, vector<8x100xf32> -> vector<8x100xf32>
    %c0_5 = arith.constant 0 : index
    %c0_6 = arith.constant 0 : index
    %6 = vector.load %arg2[%c0_5, %c0_6] : memref<8x32xf32, #tpu.memory_space<vmem>>, vector<8x32xf32>
    %c32 = arith.constant 32 : index
    %c0_7 = arith.constant 0 : index
    %7 = vector.load %arg5[%c32, %c0_7] : memref<128x100xf32, #tpu.memory_space<vmem>>, vector<32x100xf32>
    %cst_8 = arith.constant dense<0.000000e+00> : vector<8x100xf32>
    %8 = tpu.matmul %6, %7, %cst_8 {dimension_numbers = #tpu.dot_dimension_numbers<[1], [0], [0], [1], [0, 0, 1, 1], [], []>} : vector<8x32xf32>, vector<32x100xf32>, vector<8x100xf32> -> vector<8x100xf32>
    %9 = arith.addf %5, %8 : vector<8x100xf32>
    %c0_9 = arith.constant 0 : index
    %c0_10 = arith.constant 0 : index
    %10 = vector.load %arg3[%c0_9, %c0_10] : memref<8x32xf32, #tpu.memory_space<vmem>>, vector<8x32xf32>
    %c64 = arith.constant 64 : index
    %c0_11 = arith.constant 0 : index
    %11 = vector.load %arg5[%c64, %c0_11] : memref<128x100xf32, #tpu.memory_space<vmem>>, vector<32x100xf32>
    %cst_12 = arith.constant dense<0.000000e+00> : vector<8x100xf32>
    %12 = tpu.matmul %10, %11, %cst_12 {dimension_numbers = #tpu.dot_dimension_numbers<[1], [0], [0], [1], [0, 0, 1, 1], [], []>} : vector<8x32xf32>, vector<32x100xf32>, vector<8x100xf32> -> vector<8x100xf32>
    %13 = arith.addf %9, %12 : vector<8x100xf32>
    %c0_13 = arith.constant 0 : index
    %c0_14 = arith.constant 0 : index
    %14 = vector.load %arg4[%c0_13, %c0_14] : memref<8x32xf32, #tpu.memory_space<vmem>>, vector<8x32xf32>
    %c96 = arith.constant 96 : index
    %c0_15 = arith.constant 0 : index
    %15 = vector.load %arg5[%c96, %c0_15] : memref<128x100xf32, #tpu.memory_space<vmem>>, vector<32x100xf32>
    %cst_16 = arith.constant dense<0.000000e+00> : vector<8x100xf32>
    %16 = tpu.matmul %14, %15, %cst_16 {dimension_numbers = #tpu.dot_dimension_numbers<[1], [0], [0], [1], [0, 0, 1, 1], [], []>} : vector<8x32xf32>, vector<32x100xf32>, vector<8x100xf32> -> vector<8x100xf32>
    %17 = arith.addf %13, %16 : vector<8x100xf32>
    %18 = vector.broadcast %1 : vector<1x100xf32> to vector<8x100xf32>
    %19 = arith.addf %17, %18 : vector<8x100xf32>
    %cst_17 = arith.constant 0.000000e+00 : f32
    %20 = vector.broadcast %cst_17 : f32 to vector<8x100xf32>
    %21 = arith.maximumf %19, %20 : vector<8x100xf32>
    %c0_18 = arith.constant 0 : index
    %c0_19 = arith.constant 0 : index
    %22 = vector.load %arg6[%c0_18, %c0_19] : memref<100x10xf32, #tpu.memory_space<vmem>>, vector<100x10xf32>
    %cst_20 = arith.constant dense<0.000000e+00> : vector<8x10xf32>
    %23 = tpu.matmul %21, %22, %cst_20 {dimension_numbers = #tpu.dot_dimension_numbers<[1], [0], [0], [1], [0, 0, 1, 1], [], []>} : vector<8x100xf32>, vector<100x10xf32>, vector<8x10xf32> -> vector<8x10xf32>
    %24 = vector.broadcast %2 : vector<1x10xf32> to vector<8x10xf32>
    %25 = arith.addf %23, %24 : vector<8x10xf32>
    %cst_21 = arith.constant 0.000000e+00 : f32
    %26 = vector.broadcast %cst_21 : f32 to vector<8x10xf32>
    %27 = arith.cmpf ogt, %25, %26 : vector<8x10xf32>
    %cst_22 = arith.constant 0.00999999977 : f32
    %28 = vector.broadcast %cst_22 : f32 to vector<8x10xf32>
    %29 = arith.mulf %28, %25 : vector<8x10xf32>
    %30 = arith.select %27, %25, %29 : vector<8x10xi1>, vector<8x10xf32>
    %c0_23 = arith.constant 0 : index
    %c0_24 = arith.constant 0 : index
    %31 = vector.load %arg8[%c0_23, %c0_24] : memref<8x10xf32, #tpu.memory_space<vmem>>, vector<8x10xf32>
    tpu.vector_store %arg8[%c0_23, %c0_24], %30 {strides = array<i32>} : memref<8x10xf32, #tpu.memory_space<vmem>>, vector<8x10xf32>,
    return
  }
  func.func @transform_0(%arg0: i32) -> (i32, i32) {
    %c0_i32 = arith.constant 0 : i32
    %c0_i32_0 = arith.constant 0 : i32
    return %arg0, %c0_i32 : i32, i32
  }
  func.func @transform_1(%arg0: i32) -> (i32, i32) {
    %c0_i32 = arith.constant 0 : i32
    %c0_i32_0 = arith.constant 0 : i32
    return %arg0, %c0_i32 : i32, i32
  }
  func.func @transform_2(%arg0: i32) -> (i32, i32) {
    %c0_i32 = arith.constant 0 : i32
    %c0_i32_0 = arith.constant 0 : i32
    return %arg0, %c0_i32 : i32, i32
  }
  func.func @transform_3(%arg0: i32) -> (i32, i32) {
    %c0_i32 = arith.constant 0 : i32
    %c0_i32_0 = arith.constant 0 : i32
    return %arg0, %c0_i32 : i32, i32
  }
  func.func @transform_4(%arg0: i32) -> (i32, i32) {
    %c0_i32 = arith.constant 0 : i32
    %c0_i32_0 = arith.constant 0 : i32
    %c0_i32_1 = arith.constant 0 : i32
    return %c0_i32, %c0_i32_0 : i32, i32
  }
  func.func @transform_5(%arg0: i32) -> (i32, i32) {
    %c0_i32 = arith.constant 0 : i32
    %c0_i32_0 = arith.constant 0 : i32
    %c0_i32_1 = arith.constant 0 : i32
    return %c0_i32, %c0_i32_0 : i32, i32
  }
  func.func @transform_6(%arg0: i32) -> (i32, i32) {
    %c0_i32 = arith.constant 0 : i32
    %c0_i32_0 = arith.constant 0 : i32
    %c0_i32_1 = arith.constant 0 : i32
    return %c0_i32, %c0_i32_0 : i32, i32
  }
  func.func @transform_7(%arg0: i32) -> (i32, i32) {
    %c0_i32 = arith.constant 0 : i32
    %c0_i32_0 = arith.constant 0 : i32
    return %arg0, %c0_i32 : i32, i32
  }
}

</mosaic_0001>

<llo_original>
// kernel: tpu_custom_call.1
$region0: #{tpu_custom_call.1}
  #allocation0 [shape = 'u32[]', space=smem, size = 0x4, offset = 0x4, fixed_abs, tag = 'smem constant byte address 0x4 - core index']
  #allocation1 [shape = 'u32[144,128]{1,0:T(1,128)}', space=vmem, size = 0x12000, scoped, tag = 'internal scratch']
  %s0 = inlined_call_operand.vmem [shape: f32[8,32], index: 0, kind: input, shape index: {}]
  %s1 = inlined_call_operand.vmem [shape: f32[8,32], index: 1, kind: input, shape index: {}]
  %s2 = inlined_call_operand.vmem [shape: f32[8,32], index: 2, kind: input, shape index: {}]
  %s3 = inlined_call_operand.vmem [shape: f32[8,32], index: 3, kind: input, shape index: {}]
  %s4 = inlined_call_operand.vmem [shape: f32[128,100], index: 4, kind: input, shape index: {}]
  %s5 = inlined_call_operand.vmem [shape: f32[100,10], index: 5, kind: input, shape index: {}]
  %s6 = inlined_call_operand.vmem [shape: f32[2,128], index: 6, kind: input, shape index: {}]
  %s7 = inlined_call_operand.hbm [shape: f32[8,10], index: 7, kind: output, shape index: {}]
  %s8 = sld [smem:[#allocation0]]
  $region38: #{tpu_custom_call.1} parent=0
    _
  %s10 = ssub.s32 1, %s8
  %s11 = scalar_select 0, %s10, %s8
  $region1: #{tpu_custom_call.1} parent=0
    #allocation2 [shape = 'u8[4096]{0}', space=vmem, size = 0x1000, scoped, tag = 'output window, operand 0, single buffered']
    #allocation3 [shape = 's32[1]{0}', space=sflag, size = 0x4, scoped, tag = 'scoped memory for tpu_custom_call.1']
    %12 = vsyncpa [#allocation3], 0
    // Predicated region
    $region2: #{tpu_custom_call.1} parent=1 // pred_check
      _
    $region3: #{tpu_custom_call.1} parent=1 // pred_check_branch
      %14 = sbr.rel (0) target = $region5
    $region4: #{tpu_custom_call.1} parent=1 // pred_region
      _
    $region5: #{tpu_custom_call.1} parent=1 // pred_fallthru
      _
    // Predicated region
    $region6: #{tpu_custom_call.1} parent=1 // pred_check
      _
    $region7: #{tpu_custom_call.1} parent=1 // pred_check_branch
      %16 = sbr.rel (0) target = $region9
    $region8: #{tpu_custom_call.1} parent=1 // pred_region
      _
    $region9: #{tpu_custom_call.1} parent=1 // pred_fallthru
      _
    // Predicated region
    $region10: #{tpu_custom_call.1} parent=1 // pred_check
      _
    $region11: #{tpu_custom_call.1} parent=1 // pred_check_branch
      %18 = sbr.rel (0) target = $region13
    $region12: #{tpu_custom_call.1} parent=1 // pred_region
      _
    $region13: #{tpu_custom_call.1} parent=1 // pred_fallthru
      _
    // Predicated region
    $region14: #{tpu_custom_call.1} parent=1 // pred_check
      _
    $region15: #{tpu_custom_call.1} parent=1 // pred_check_branch
      %20 = sbr.rel (0) target = $region17
    $region16: #{tpu_custom_call.1} parent=1 // pred_region
      _
    $region17: #{tpu_custom_call.1} parent=1 // pred_fallthru
      _
    // Predicated region
    $region18: #{tpu_custom_call.1} parent=1 // pred_check
      _
    $region19: #{tpu_custom_call.1} parent=1 // pred_check_branch
      %22 = sbr.rel (0) target = $region21
    $region20: #{tpu_custom_call.1} parent=1 // pred_region
      _
    $region21: #{tpu_custom_call.1} parent=1 // pred_fallthru
      _
    // Predicated region
    $region22: #{tpu_custom_call.1} parent=1 // pred_check
      _
    $region23: #{tpu_custom_call.1} parent=1 // pred_check_branch
      %24 = sbr.rel (0) target = $region25
    $region24: #{tpu_custom_call.1} parent=1 // pred_region
      _
    $region25: #{tpu_custom_call.1} parent=1 // pred_fallthru
      _
    // Predicated region
    $region26: #{tpu_custom_call.1} parent=1 // pred_check
      _
    $region27: #{tpu_custom_call.1} parent=1 // pred_check_branch
      %26 = sbr.rel (0) target = $region29
    $region28: #{tpu_custom_call.1} parent=1 // pred_region
      _
    $region29: #{tpu_custom_call.1} parent=1 // pred_fallthru
      _
    %v27 = vld [vmem:[%s6] sm:$0x3]
    %v28 = vld [vmem:[%s0] sm:$0xff]
    %v29 = vld [vmem:[%s4] sm:$0xff]
    %v30 = vld [vmem:[%s4 + $0x8] sm:$0xff]
    %v31 = vld [vmem:[%s4 + $0x10] sm:$0xff]
    %v32 = vld [vmem:[%s4 + $0x18] sm:$0xff]
    %v33 = vld [vmem:[%s1] sm:$0xff]
    %v34 = vld [vmem:[%s4 + $0x20] sm:$0xff]
    %v35 = vld [vmem:[%s4 + $0x28] sm:$0xff]
    %v36 = vld [vmem:[%s4 + $0x30] sm:$0xff]
    %v37 = vld [vmem:[%s4 + $0x38] sm:$0xff]
    %vm38 = vcmask 261120
    %v40 = vsel %vm38, %v33, 0
    %42 = vmatprep.subr.mxu0 0.0
    %43 = vmatpush1.msra.mxu0 %v34
    %44 = vmatprep.subr.mxu0 0.0
    %45 = vmatpush1.msra.mxu0 %v35
    %46 = vmatprep.subr.mxu0 0.0
    %47 = vmatpush1.msra.mxu0 %v36
    %48 = vmatprep.subr.mxu0 0.0
    %49 = vmatpush1.msra.mxu0 %v37
    %50 = vmatprep.subr.mxu0 0.0
    %51 = vmatpush1.msra.mxu0 0.0
    %52 = vmatprep.subr.mxu0 0.0
    %53 = vmatpush1.msra.mxu0 0.0
    %54 = vmatprep.subr.mxu0 0.0
    %55 = vmatpush1.msra.mxu0 0.0
    %56 = vmatprep.subr.mxu0 0.0
    %57 = vmatpush1.msra.mxu0 0.0
    %58 = vmatprep.subr.mxu0 0.0
    %59 = vmatpush1.msra.mxu0 0.0
    %60 = vmatprep.subr.mxu0 0.0
    %61 = vmatpush1.msra.mxu0 0.0
    %62 = vmatprep.subr.mxu0 0.0
    %63 = vmatpush1.msra.mxu0 0.0
    %64 = vmatprep.subr.mxu0 0.0
    %65 = vmatpush1.msra.mxu0 0.0
    %66 = vmatprep.subr.mxu0 0.0
    %67 = vmatpush1.msra.mxu0 0.0
    %68 = vmatprep.subr.mxu0 0.0
    %69 = vmatpush1.msra.mxu0 0.0
    %70 = vmatprep.subr.mxu0 0.0
    %71 = vmatpush1.msra.mxu0 0.0
    %72 = vmatprep.subr.mxu0 0.0
    %73 = vmatpush1.msra.mxu0 0.0
    %74 = vmatprep.subr.mxu0 0.0
    %75 = vmatpush1.msra.mxu0 0.0
    %76 = vmatprep.subr.mxu0 0.0
    %77 = vmatpush1.msra.mxu0 0.0
    %78 = vmatprep.subr.mxu0 0.0
    %79 = vmatpush1.msra.mxu0 0.0
    %80 = vmatprep.subr.mxu0 0.0
    %81 = vmatpush1.msra.mxu0 0.0
    %82 = vmatprep.subr.mxu0 0.0
    %83 = vmatpush1.msra.mxu0 0.0
    %84 = vmatprep.subr.mxu0 0.0
    %85 = vmatpush1.msra.mxu0 0.0
    %86 = vmatprep.subr.mxu0 0.0
    %87 = vmatpush1.msra.mxu0 0.0
    %88 = vmatprep.subr.mxu0 0.0
    %89 = vmatpush1.msra.mxu0 0.0
    %90 = vmatprep.subr.mxu0 0.0
    %91 = vmatpush1.msra.mxu0 0.0
    %92 = vmatprep.subr.mxu0 0.0
    %93 = vmatpush1.msra.mxu0 0.0
    %94 = vmatprep.subr.mxu0 0.0
    %95 = vmatpush1.msra.mxu0 0.0
    %96 = vmatprep.subr.mxu0 0.0
    %97 = vmatpush1.msra.mxu0 0.0
    %98 = vmatprep.subr.mxu0 0.0
    %99 = vmatpush1.msra.mxu0 0.0
    %100 = vmatprep.subr.mxu0 0.0
    %101 = vmatpush1.msra.mxu0 0.0
    %102 = vmatprep.subr.mxu0 0.0
    %103 = vmatpush1.msra.mxu0 0.0
    %104 = vmatprep.subr.mxu0 0.0
    %105 = vmatpush1.msra.mxu0 0.0
    %106 = vmatprep.mubr.f32.mxu0 0.0
    %107 = vmatmul.mubr.f32.gmra.mrb[0].mxu0 %v40
    %v108 = vpop.f32.mrb[0].mxu0
    %v109 = vadd.f32 0.0, %v108
    %v110 = vpop.f32.mrb[0].mxu0
    %111 = vdwg.mxu0
    %v113 = vsel %vm38, %v28, 0
    %115 = vmatprep.subr.mxu0 0.0
    %116 = vmatpush1.msra.mxu0 %v29
    %117 = vmatprep.subr.mxu0 0.0
    %118 = vmatpush1.msra.mxu0 %v30
    %119 = vmatprep.subr.mxu0 0.0
    %120 = vmatpush1.msra.mxu0 %v31
    %121 = vmatprep.subr.mxu0 0.0
    %122 = vmatpush1.msra.mxu0 %v32
    %123 = vmatprep.subr.mxu0 0.0
    %124 = vmatpush1.msra.mxu0 0.0
    %125 = vmatprep.subr.mxu0 0.0
    %126 = vmatpush1.msra.mxu0 0.0
    %127 = vmatprep.subr.mxu0 0.0
    %128 = vmatpush1.msra.mxu0 0.0
    %129 = vmatprep.subr.mxu0 0.0
    %130 = vmatpush1.msra.mxu0 0.0
    %131 = vmatprep.subr.mxu0 0.0
    %132 = vmatpush1.msra.mxu0 0.0
    %133 = vmatprep.subr.mxu0 0.0
    %134 = vmatpush1.msra.mxu0 0.0
    %135 = vmatprep.subr.mxu0 0.0
    %136 = vmatpush1.msra.mxu0 0.0
    %137 = vmatprep.subr.mxu0 0.0
    %138 = vmatpush1.msra.mxu0 0.0
    %139 = vmatprep.subr.mxu0 0.0
    %140 = vmatpush1.msra.mxu0 0.0
    %141 = vmatprep.subr.mxu0 0.0
    %142 = vmatpush1.msra.mxu0 0.0
    %143 = vmatprep.subr.mxu0 0.0
    %144 = vmatpush1.msra.mxu0 0.0
    %145 = vmatprep.subr.mxu0 0.0
    %146 = vmatpush1.msra.mxu0 0.0
    %147 = vmatprep.subr.mxu0 0.0
    %148 = vmatpush1.msra.mxu0 0.0
    %149 = vmatprep.subr.mxu0 0.0
    %150 = vmatpush1.msra.mxu0 0.0
    %151 = vmatprep.subr.mxu0 0.0
    %152 = vmatpush1.msra.mxu0 0.0
    %153 = vmatprep.subr.mxu0 0.0
    %154 = vmatpush1.msra.mxu0 0.0
    %155 = vmatprep.subr.mxu0 0.0
    %156 = vmatpush1.msra.mxu0 0.0
    %157 = vmatprep.subr.mxu0 0.0
    %158 = vmatpush1.msra.mxu0 0.0
    %159 = vmatprep.subr.mxu0 0.0
    %160 = vmatpush1.msra.mxu0 0.0
    %161 = vmatprep.subr.mxu0 0.0
    %162 = vmatpush1.msra.mxu0 0.0
    %163 = vmatprep.subr.mxu0 0.0
    %164 = vmatpush1.msra.mxu0 0.0
    %165 = vmatprep.subr.mxu0 0.0
    %166 = vmatpush1.msra.mxu0 0.0
    %167 = vmatprep.subr.mxu0 0.0
    %168 = vmatpush1.msra.mxu0 0.0
    %169 = vmatprep.subr.mxu0 0.0
    %170 = vmatpush1.msra.mxu0 0.0
    %171 = vmatprep.subr.mxu0 0.0
    %172 = vmatpush1.msra.mxu0 0.0
    %173 = vmatprep.subr.mxu0 0.0
    %174 = vmatpush1.msra.mxu0 0.0
    %175 = vmatprep.subr.mxu0 0.0
    %176 = vmatpush1.msra.mxu0 0.0
    %177 = vmatprep.subr.mxu0 0.0
    %178 = vmatpush1.msra.mxu0 0.0
    %179 = vmatprep.mubr.f32.mxu0 0.0
    %180 = vmatmul.mubr.f32.gmra.mrb[0].mxu0 %v113
    %v181 = vpop.f32.mrb[0].mxu0
    %v182 = vadd.f32 %v109, %v181
    %v183 = vpop.f32.mrb[0].mxu0
    %184 = vdwg.mxu0
    %v185 = vld [vmem:[%s2] sm:$0xff]
    %v186 = vld [vmem:[%s4 + $0x40] sm:$0xff]
    %v187 = vld [vmem:[%s4 + $0x48] sm:$0xff]
    %v188 = vld [vmem:[%s4 + $0x50] sm:$0xff]
    %v189 = vld [vmem:[%s4 + $0x58] sm:$0xff]
    %v191 = vsel %vm38, %v185, 0
    %193 = vmatprep.subr.mxu0 0.0
    %194 = vmatpush1.msra.mxu0 %v186
    %195 = vmatprep.subr.mxu0 0.0
    %196 = vmatpush1.msra.mxu0 %v187
    %197 = vmatprep.subr.mxu0 0.0
    %198 = vmatpush1.msra.mxu0 %v188
    %199 = vmatprep.subr.mxu0 0.0
    %200 = vmatpush1.msra.mxu0 %v189
    %201 = vmatprep.subr.mxu0 0.0
    %202 = vmatpush1.msra.mxu0 0.0
    %203 = vmatprep.subr.mxu0 0.0
    %204 = vmatpush1.msra.mxu0 0.0
    %205 = vmatprep.subr.mxu0 0.0
    %206 = vmatpush1.msra.mxu0 0.0
    %207 = vmatprep.subr.mxu0 0.0
    %208 = vmatpush1.msra.mxu0 0.0
    %209 = vmatprep.subr.mxu0 0.0
    %210 = vmatpush1.msra.mxu0 0.0
    %211 = vmatprep.subr.mxu0 0.0
    %212 = vmatpush1.msra.mxu0 0.0
    %213 = vmatprep.subr.mxu0 0.0
    %214 = vmatpush1.msra.mxu0 0.0
    %215 = vmatprep.subr.mxu0 0.0
    %216 = vmatpush1.msra.mxu0 0.0
    %217 = vmatprep.subr.mxu0 0.0
    %218 = vmatpush1.msra.mxu0 0.0
    %219 = vmatprep.subr.mxu0 0.0
    %220 = vmatpush1.msra.mxu0 0.0
    %221 = vmatprep.subr.mxu0 0.0
    %222 = vmatpush1.msra.mxu0 0.0
    %223 = vmatprep.subr.mxu0 0.0
    %224 = vmatpush1.msra.mxu0 0.0
    %225 = vmatprep.subr.mxu0 0.0
    %226 = vmatpush1.msra.mxu0 0.0
    %227 = vmatprep.subr.mxu0 0.0
    %228 = vmatpush1.msra.mxu0 0.0
    %229 = vmatprep.subr.mxu0 0.0
    %230 = vmatpush1.msra.mxu0 0.0
    %231 = vmatprep.subr.mxu0 0.0
    %232 = vmatpush1.msra.mxu0 0.0
    %233 = vmatprep.subr.mxu0 0.0
    %234 = vmatpush1.msra.mxu0 0.0
    %235 = vmatprep.subr.mxu0 0.0
    %236 = vmatpush1.msra.mxu0 0.0
    %237 = vmatprep.subr.mxu0 0.0
    %238 = vmatpush1.msra.mxu0 0.0
    %239 = vmatprep.subr.mxu0 0.0
    %240 = vmatpush1.msra.mxu0 0.0
    %241 = vmatprep.subr.mxu0 0.0
    %242 = vmatpush1.msra.mxu0 0.0
    %243 = vmatprep.subr.mxu0 0.0
    %244 = vmatpush1.msra.mxu0 0.0
    %245 = vmatprep.subr.mxu0 0.0
    %246 = vmatpush1.msra.mxu0 0.0
    %247 = vmatprep.subr.mxu0 0.0
    %248 = vmatpush1.msra.mxu0 0.0
    %249 = vmatprep.subr.mxu0 0.0
    %250 = vmatpush1.msra.mxu0 0.0
    %251 = vmatprep.subr.mxu0 0.0
    %252 = vmatpush1.msra.mxu0 0.0
    %253 = vmatprep.subr.mxu0 0.0
    %254 = vmatpush1.msra.mxu0 0.0
    %255 = vmatprep.subr.mxu0 0.0
    %256 = vmatpush1.msra.mxu0 0.0
    %257 = vmatprep.mubr.f32.mxu0 0.0
    %258 = vmatmul.mubr.f32.gmra.mrb[0].mxu0 %v191
    %v259 = vpop.f32.mrb[0].mxu0
    %v260 = vadd.f32 0.0, %v259
    %v261 = vpop.f32.mrb[0].mxu0
    %262 = vdwg.mxu0
    %v263 = vadd.f32 %v182, %v260
    %v264 = vld [vmem:[%s3] sm:$0xff]
    %v265 = vld [vmem:[%s4 + $0x60] sm:$0xff]
    %v266 = vld [vmem:[%s4 + $0x68] sm:$0xff]
    %v267 = vld [vmem:[%s4 + $0x70] sm:$0xff]
    %v268 = vld [vmem:[%s4 + $0x78] sm:$0xff]
    %v270 = vsel %vm38, %v264, 0
    %272 = vmatprep.subr.mxu0 0.0
    %273 = vmatpush1.msra.mxu0 %v265
    %274 = vmatprep.subr.mxu0 0.0
    %275 = vmatpush1.msra.mxu0 %v266
    %276 = vmatprep.subr.mxu0 0.0
    %277 = vmatpush1.msra.mxu0 %v267
    %278 = vmatprep.subr.mxu0 0.0
    %279 = vmatpush1.msra.mxu0 %v268
    %280 = vmatprep.subr.mxu0 0.0
    %281 = vmatpush1.msra.mxu0 0.0
    %282 = vmatprep.subr.mxu0 0.0
    %283 = vmatpush1.msra.mxu0 0.0
    %284 = vmatprep.subr.mxu0 0.0
    %285 = vmatpush1.msra.mxu0 0.0
    %286 = vmatprep.subr.mxu0 0.0
    %287 = vmatpush1.msra.mxu0 0.0
    %288 = vmatprep.subr.mxu0 0.0
    %289 = vmatpush1.msra.mxu0 0.0
    %290 = vmatprep.subr.mxu0 0.0
    %291 = vmatpush1.msra.mxu0 0.0
    %292 = vmatprep.subr.mxu0 0.0
    %293 = vmatpush1.msra.mxu0 0.0
    %294 = vmatprep.subr.mxu0 0.0
    %295 = vmatpush1.msra.mxu0 0.0
    %296 = vmatprep.subr.mxu0 0.0
    %297 = vmatpush1.msra.mxu0 0.0
    %298 = vmatprep.subr.mxu0 0.0
    %299 = vmatpush1.msra.mxu0 0.0
    %300 = vmatprep.subr.mxu0 0.0
    %301 = vmatpush1.msra.mxu0 0.0
    %302 = vmatprep.subr.mxu0 0.0
    %303 = vmatpush1.msra.mxu0 0.0
    %304 = vmatprep.subr.mxu0 0.0
    %305 = vmatpush1.msra.mxu0 0.0
    %306 = vmatprep.subr.mxu0 0.0
    %307 = vmatpush1.msra.mxu0 0.0
    %308 = vmatprep.subr.mxu0 0.0
    %309 = vmatpush1.msra.mxu0 0.0
    %310 = vmatprep.subr.mxu0 0.0
    %311 = vmatpush1.msra.mxu0 0.0
    %312 = vmatprep.subr.mxu0 0.0
    %313 = vmatpush1.msra.mxu0 0.0
    %314 = vmatprep.subr.mxu0 0.0
    %315 = vmatpush1.msra.mxu0 0.0
    %316 = vmatprep.subr.mxu0 0.0
    %317 = vmatpush1.msra.mxu0 0.0
    %318 = vmatprep.subr.mxu0 0.0
    %319 = vmatpush1.msra.mxu0 0.0
    %320 = vmatprep.subr.mxu0 0.0
    %321 = vmatpush1.msra.mxu0 0.0
    %322 = vmatprep.subr.mxu0 0.0
    %323 = vmatpush1.msra.mxu0 0.0
    %324 = vmatprep.subr.mxu0 0.0
    %325 = vmatpush1.msra.mxu0 0.0
    %326 = vmatprep.subr.mxu0 0.0
    %327 = vmatpush1.msra.mxu0 0.0
    %328 = vmatprep.subr.mxu0 0.0
    %329 = vmatpush1.msra.mxu0 0.0
    %330 = vmatprep.subr.mxu0 0.0
    %331 = vmatpush1.msra.mxu0 0.0
    %332 = vmatprep.subr.mxu0 0.0
    %333 = vmatpush1.msra.mxu0 0.0
    %334 = vmatprep.subr.mxu0 0.0
    %335 = vmatpush1.msra.mxu0 0.0
    %336 = vmatprep.mubr.f32.mxu0 0.0
    %337 = vmatmul.mubr.f32.gmra.mrb[0].mxu0 %v270
    %v338 = vpop.f32.mrb[0].mxu0
    %v339 = vadd.f32 0.0, %v338
    %v340 = vpop.f32.mrb[0].mxu0
    %341 = vdwg.mxu0
    %v342 = vadd.f32 %v263, %v339
    %v343 = vlaneseq
    %v344 = vshrl.u32 %v343, 7
    %v345 = vsub.s32 0, %v344
    %v346 = vrot.slane %v27, %v345
    %v347 = vadd.f32 %v342, %v346
    %v348 = vmax.f32 %v347, 0.0
    %v349 = vld [vmem:[%s5] sm:$0xff]
    %v350 = vld [vmem:[%s5 + $0x8] sm:$0xff]
    %v351 = vld [vmem:[%s5 + $0x10] sm:$0xff]
    %v352 = vld [vmem:[%s5 + $0x18] sm:$0xff]
    %v353 = vld [vmem:[%s5 + $0x20] sm:$0xff]
    %v354 = vld [vmem:[%s5 + $0x28] sm:$0xff]
    %v355 = vld [vmem:[%s5 + $0x30] sm:$0xff]
    %v356 = vld [vmem:[%s5 + $0x38] sm:$0xff]
    %v357 = vld [vmem:[%s5 + $0x40] sm:$0xff]
    %v358 = vld [vmem:[%s5 + $0x48] sm:$0xff]
    %v359 = vld [vmem:[%s5 + $0x50] sm:$0xff]
    %v360 = vld [vmem:[%s5 + $0x58] sm:$0xff]
    %v361 = vld [vmem:[%s5 + $0x60] sm:$0xf]
    %v362 = vlaneseq
    %v363 = vshrl.u32 %v362, 7
    %v364 = vsub.s32 1, %v363
    %v365 = vrot.slane %v27, %v364
    %vm366 = vcmask 818176
    %v368 = vsel %vm366, %v348, 0
    %vm370 = vcmask 1043456
    %v372 = vsel %vm370, %v361, 0
    %374 = vmatprep.subr.mxu0 0.0
    %375 = vmatpush1.msra.mxu0 %v349
    %376 = vmatprep.subr.mxu0 0.0
    %377 = vmatpush1.msra.mxu0 %v350
    %378 = vmatprep.subr.mxu0 0.0
    %379 = vmatpush1.msra.mxu0 %v351
    %380 = vmatprep.subr.mxu0 0.0
    %381 = vmatpush1.msra.mxu0 %v352
    %382 = vmatprep.subr.mxu0 0.0
    %383 = vmatpush1.msra.mxu0 %v353
    %384 = vmatprep.subr.mxu0 0.0
    %385 = vmatpush1.msra.mxu0 %v354
    %386 = vmatprep.subr.mxu0 0.0
    %387 = vmatpush1.msra.mxu0 %v355
    %388 = vmatprep.subr.mxu0 0.0
    %389 = vmatpush1.msra.mxu0 %v356
    %390 = vmatprep.subr.mxu0 0.0
    %391 = vmatpush1.msra.mxu0 %v357
    %392 = vmatprep.subr.mxu0 0.0
    %393 = vmatpush1.msra.mxu0 %v358
    %394 = vmatprep.subr.mxu0 0.0
    %395 = vmatpush1.msra.mxu0 %v359
    %396 = vmatprep.subr.mxu0 0.0
    %397 = vmatpush1.msra.mxu0 %v360
    %398 = vmatprep.subr.mxu0 0.0
    %399 = vmatpush1.msra.mxu0 %v372
    %400 = vmatprep.subr.mxu0 0.0
    %401 = vmatpush1.msra.mxu0 0.0
    %402 = vmatprep.subr.mxu0 0.0
    %403 = vmatpush1.msra.mxu0 0.0
    %404 = vmatprep.subr.mxu0 0.0
    %405 = vmatpush1.msra.mxu0 0.0
    %406 = vmatprep.subr.mxu0 0.0
    %407 = vmatpush1.msra.mxu0 0.0
    %408 = vmatprep.subr.mxu0 0.0
    %409 = vmatpush1.msra.mxu0 0.0
    %410 = vmatprep.subr.mxu0 0.0
    %411 = vmatpush1.msra.mxu0 0.0
    %412 = vmatprep.subr.mxu0 0.0
    %413 = vmatpush1.msra.mxu0 0.0
    %414 = vmatprep.subr.mxu0 0.0
    %415 = vmatpush1.msra.mxu0 0.0
    %416 = vmatprep.subr.mxu0 0.0
    %417 = vmatpush1.msra.mxu0 0.0
    %418 = vmatprep.subr.mxu0 0.0
    %419 = vmatpush1.msra.mxu0 0.0
    %420 = vmatprep.subr.mxu0 0.0
    %421 = vmatpush1.msra.mxu0 0.0
    %422 = vmatprep.subr.mxu0 0.0
    %423 = vmatpush1.msra.mxu0 0.0
    %424 = vmatprep.subr.mxu0 0.0
    %425 = vmatpush1.msra.mxu0 0.0
    %426 = vmatprep.subr.mxu0 0.0
    %427 = vmatpush1.msra.mxu0 0.0
    %428 = vmatprep.subr.mxu0 0.0
    %429 = vmatpush1.msra.mxu0 0.0
    %430 = vmatprep.subr.mxu0 0.0
    %431 = vmatpush1.msra.mxu0 0.0
    %432 = vmatprep.subr.mxu0 0.0
    %433 = vmatpush1.msra.mxu0 0.0
    %434 = vmatprep.subr.mxu0 0.0
    %435 = vmatpush1.msra.mxu0 0.0
    %436 = vmatprep.subr.mxu0 0.0
    %437 = vmatpush1.msra.mxu0 0.0
    %438 = vmatprep.mubr.f32.mxu0 0.0
    %439 = vmatmul.mubr.f32.gmra.mrb[0].mxu0 %v368
    %v440 = vpop.f32.mrb[0].mxu0
    %v441 = vadd.f32 %v365, %v440
    %v442 = vpop.f32.mrb[0].mxu0
    %443 = vdwg.mxu0
    %vm444 = vcmp.gt.f32.partialorder %v441, 0.0
    %v445 = vmul.f32 %v441, 0.01
    %v446 = vsel %vm444, %v441, %v445
    %vm447 = vcmask 80896
    %448 = vst.msk [vmem:[#allocation2] sm:$0xff] %vm447, %v446
    // Predicated region
    $region30: #{tpu_custom_call.1} parent=1 // pred_check
      _
    $region31: #{tpu_custom_call.1} parent=1 // pred_check_branch
      %450 = sbr.rel (0) target = $region33
    $region32: #{tpu_custom_call.1} parent=1 // pred_region
      %s452 = ssub.s32 128, 128
      %453 = vsyncadd [#allocation3], %s452
      %s455 = sshll.u32 [#allocation2], 4
      %s456 = int_to_ptr.vmem [resolvable:$true] %s455
      %458 = dma.vmem_to_hbm [thread:$0]  %s456, 128, %s7, [#allocation3]
    $region33: #{tpu_custom_call.1} parent=1 // pred_fallthru
      _
    // Predicated region
    $region34: #{tpu_custom_call.1} parent=1 // pred_check
      _
    $region35: #{tpu_custom_call.1} parent=1 // pred_check_branch
      %460 = sbr.rel (0) target = $region37
    $region36: #{tpu_custom_call.1} parent=1 // pred_region
      %461 = dma.done [#allocation3], 128
    $region37: #{tpu_custom_call.1} parent=1 // pred_fallthru
      _
    %462 = vsyncpa [#allocation3], 1

</llo_original>
